<compile_context>
chip_gen: v7x
topology: tpu7x:2x2x1
jax: 0.10.0
libtpu: 0.0.40
codegen_flags: <defaults>
</compile_context>

<pallas_src>
import numpy as np
import jax
import jax.numpy as jnp
from jax import lax
from jax.experimental import pallas as pl
from jax.experimental.pallas import tpu as pltpu


_BIG = float(2 ** 30)          # sentinel label for background / "no neighbour"
_STEPS_PER_CHECK = 4           # propagation steps between convergence checks


def _cluster_dice_kernel(p_ref, t_ref, loss_ref):
    f32 = jnp.float32
    p = p_ref[...]                               # (Hp, Wp) f32
    t = t_ref[...]                               # (Hp, Wp) f32
    Hp, Wp = p.shape
    BIG = f32(_BIG)

    # Integer index maps (no float division anywhere).  Linear indices are
    # exact in f32 as long as Hp*Wp < 2**24 (~4096x4096).
    ri = lax.broadcasted_iota(jnp.int32, (Hp, Wp), 0)
    ci = lax.broadcasted_iota(jnp.int32, (Hp, Wp), 1)
    lin = (ri * Wp + ci).astype(f32)
    rif = ri.astype(f32)
    cif = ci.astype(f32)

    # Foreground = overlay > 0 (exact PyTorch semantics: (pred + target) > 0).
    fg = (p + t) > 0.0

    # Validity masks for +/-1 rolls, hoisted out of the loop.  Built by
    # co-rolling the index maps with the SAME shift as the data, so they are
    # correct independent of the roll direction convention and mask out
    # wrap-around at the true array edges.  All shifts are non-negative:
    # a roll by -1 is expressed as a circular roll by (size - 1).
    ok_r_p = jnp.abs(pltpu.roll(rif, 1, axis=0) - rif) <= 1.0
    ok_r_m = jnp.abs(pltpu.roll(rif, Hp - 1, axis=0) - rif) <= 1.0
    ok_c_p = jnp.abs(pltpu.roll(cif, 1, axis=1) - cif) <= 1.0
    ok_c_m = jnp.abs(pltpu.roll(cif, Wp - 1, axis=1) - cif) <= 1.0

    # Initial labels: own linear index for foreground, BIG for background.
    L0 = jnp.where(fg, lin, BIG)

    def prop_step(L):
        # Separable 3x3 (8-connectivity) min filter over the old labels,
        # then re-mask background so it never relays labels across steps.
        up = jnp.where(ok_r_p, pltpu.roll(L, 1, axis=0), BIG)
        dn = jnp.where(ok_r_m, pltpu.roll(L, Hp - 1, axis=0), BIG)
        m1 = jnp.minimum(jnp.minimum(L, up), dn)
        lf = jnp.where(ok_c_p, pltpu.roll(m1, 1, axis=1), BIG)
        rt = jnp.where(ok_c_m, pltpu.roll(m1, Wp - 1, axis=1), BIG)
        m2 = jnp.minimum(jnp.minimum(m1, lf), rt)
        return jnp.where(fg, m2, BIG)

    # Early-exit min-label propagation.  The cap is a safety net only; the
    # loop exits as soon as a block of steps produces no change.
    max_outer = (Hp * Wp) // _STEPS_PER_CHECK + 2

    def cond_fn(carry):
        _, it, changed = carry
        return jnp.logical_and(changed, it < max_outer)

    def body_fn(carry):
        L, it, _ = carry
        Lp = L
        for _ in range(_STEPS_PER_CHECK):        # unrolled
            Lp = prop_step(Lp)
        changed = jnp.sum(jnp.where(Lp != L, 1.0, 0.0)) > 0.0
        return (Lp, it + 1, changed)

    L, _, _ = lax.while_loop(cond_fn, body_fn,
                             (L0, jnp.int32(0), jnp.array(True)))

    # ---- per-cluster dice: loop over the distinct labels actually present --
    pb = (p != 0.0).astype(f32)                  # logical_and(pred, mask) semantics
    tb = (t != 0.0).astype(f32)
    pt = pb * tb                                 # per-pixel intersection indicator
    un = pb + tb                                 # per-pixel union contribution

    first = jnp.min(L)                           # smallest cluster label; BIG if none

    def cond2(carry):
        cur, _, _ = carry
        return cur < BIG

    def body2(carry):
        cur, dsum, k = carry
        m = (L == cur).astype(f32)
        inter = jnp.sum(pt * m)
        union = jnp.sum(un * m)
        dice = jnp.where(union > 0.0,
                         2.0 * inter / jnp.maximum(union, f32(1e-12)),
                         f32(1.0))               # union == 0 -> dice = 1.0
        nxt = jnp.min(jnp.where(L > cur, L, BIG))   # next distinct label (or BIG)
        return (nxt, dsum + dice, k + 1.0)

    _, dsum, k = lax.while_loop(cond2, body2,
                                (first, jnp.float32(0.0), jnp.float32(0.0)))

    loss = jnp.where(k > 0.0, 1.0 - dsum / jnp.maximum(k, 1.0), f32(1.0))
    loss_ref[...] = jnp.full((1, 1), loss, dtype=jnp.float32)


def cluster_dice_loss(pred, target):
    """pred, target: (H, W) float masks. Returns scalar float32 loss."""
    H, W = pred.shape
    # Pad to sublane/lane multiples; padding is background and changes nothing.
    Hp = max(8, -(-H // 8) * 8)
    Wp = max(128, -(-W // 128) * 128)
    p = jnp.pad(pred.astype(jnp.float32), ((0, Hp - H), (0, Wp - W)))
    t = jnp.pad(target.astype(jnp.float32), ((0, Hp - H), (0, Wp - W)))

    out = pl.pallas_call(
        _cluster_dice_kernel,
        out_shape=jax.ShapeDtypeStruct((1, 1), jnp.float32),
        in_specs=[pl.BlockSpec(memory_space=pltpu.MemorySpace.VMEM)] * 2,
        out_specs=pl.BlockSpec(memory_space=pltpu.MemorySpace.VMEM),
        compiler_params=pltpu.CompilerParams(
            vmem_limit_bytes=32 * 1024 * 1024),
    )(p, t)
    return out[0, 0]


def _reference_loss(pred, target):
    """Pure numpy/BFS reference reproducing the PyTorch module (8-connectivity)."""
    from collections import deque
    p = np.asarray(pred)
    t = np.asarray(target)
    H, Wd = p.shape
    overlay = (p + t) > 0
    labels = -np.ones((H, Wd), dtype=np.int64)
    cur = 0
    for i in range(H):
        for j in range(Wd):
            if overlay[i, j] and labels[i, j] < 0:
                cur += 1
                dq = deque([(i, j)])
                labels[i, j] = cur
                while dq:
                    a, b = dq.popleft()
                    for da in (-1, 0, 1):
                        for db in (-1, 0, 1):
                            na, nb = a + da, b + db
                            if 0 <= na < H and 0 <= nb < Wd and overlay[na, nb] and labels[na, nb] < 0:
                                labels[na, nb] = cur
                                dq.append((na, nb))
    pb = p != 0
    tb = t != 0
    scores = []
    for c in range(1, cur + 1):
        m = labels == c
        inter = float(np.sum(pb & tb & m))
        union = float(np.sum(pb & m) + np.sum(tb & m))
        scores.append(1.0 if union == 0 else 2.0 * inter / union)
    if not scores:
        return 1.0
    return 1.0 - float(np.mean(scores))


if __name__ == "__main__":
    key = jax.random.PRNGKey(0)
    k1, k2 = jax.random.split(key)
    H, W = 16, 16
    pred = (jax.random.uniform(k1, (H, W)) > 0.7).astype(jnp.float32)
    target = (jax.random.uniform(k2, (H, W)) > 0.7).astype(jnp.float32)

    loss = cluster_dice_loss(pred, target)
    loss = jax.block_until_ready(loss)

    ref = _reference_loss(np.asarray(pred), np.asarray(target))
    assert abs(float(loss) - ref) < 1e-4, (float(loss), ref)
    print("KERNEL_OK")
</pallas_src>

<mosaic_0001>
module attributes {stable_mosaic.version = 11 : i64} {
  func.func @_cluster_dice_kernel(%arg0: memref<16x128xf32, #tpu.memory_space<vmem>>, %arg1: memref<16x128xf32, #tpu.memory_space<vmem>>, %arg2: memref<1x1xf32, #tpu.memory_space<vmem>>) attributes {dimension_semantics = [], scalar_prefetch = 0 : i64, scratch_operands = 0 : i64, tpu.core_type = #tpu.core_type<tc>} {
    %c0 = arith.constant 0 : index
    %c0_0 = arith.constant 0 : index
    %0 = vector.load %arg0[%c0, %c0_0] : memref<16x128xf32, #tpu.memory_space<vmem>>, vector<16x128xf32>
    %c0_1 = arith.constant 0 : index
    %c0_2 = arith.constant 0 : index
    %1 = vector.load %arg1[%c0_1, %c0_2] : memref<16x128xf32, #tpu.memory_space<vmem>>, vector<16x128xf32>
    %2 = tpu.iota {dimensions = array<i32: 0>} : vector<16x128xi32>
    %3 = tpu.iota {dimensions = array<i32: 1>} : vector<16x128xi32>
    %c128_i32 = arith.constant 128 : i32
    %4 = vector.broadcast %c128_i32 : i32 to vector<16x128xi32>
    %5 = arith.muli %2, %4 : vector<16x128xi32>
    %6 = arith.addi %5, %3 : vector<16x128xi32>
    %7 = arith.sitofp %6 : vector<16x128xi32> to vector<16x128xf32>
    %8 = arith.sitofp %2 : vector<16x128xi32> to vector<16x128xf32>
    %9 = arith.sitofp %3 : vector<16x128xi32> to vector<16x128xf32>
    %10 = arith.addf %0, %1 : vector<16x128xf32>
    %cst = arith.constant 0.000000e+00 : f32
    %11 = vector.broadcast %cst : f32 to vector<16x128xf32>
    %12 = arith.cmpf ogt, %10, %11 : vector<16x128xf32>
    %c1_i32 = arith.constant 1 : i32
    %13 = tpu.dynamic_rotate %8 by %c1_i32 dim 0 : vector<16x128xf32>, i32 -> vector<16x128xf32>
    %14 = arith.subf %13, %8 : vector<16x128xf32>
    %15 = math.absf %14 : vector<16x128xf32>
    %cst_3 = arith.constant 1.000000e+00 : f32
    %16 = vector.broadcast %cst_3 : f32 to vector<16x128xf32>
    %17 = arith.cmpf ole, %15, %16 : vector<16x128xf32>
    %c15_i32 = arith.constant 15 : i32
    %18 = tpu.dynamic_rotate %8 by %c15_i32 dim 0 : vector<16x128xf32>, i32 -> vector<16x128xf32>
    %19 = arith.subf %18, %8 : vector<16x128xf32>
    %20 = math.absf %19 : vector<16x128xf32>
    %cst_4 = arith.constant 1.000000e+00 : f32
    %21 = vector.broadcast %cst_4 : f32 to vector<16x128xf32>
    %22 = arith.cmpf ole, %20, %21 : vector<16x128xf32>
    %c1_i32_5 = arith.constant 1 : i32
    %23 = tpu.dynamic_rotate %9 by %c1_i32_5 dim 1 : vector<16x128xf32>, i32 -> vector<16x128xf32>
    %24 = arith.subf %23, %9 : vector<16x128xf32>
    %25 = math.absf %24 : vector<16x128xf32>
    %cst_6 = arith.constant 1.000000e+00 : f32
    %26 = vector.broadcast %cst_6 : f32 to vector<16x128xf32>
    %27 = arith.cmpf ole, %25, %26 : vector<16x128xf32>
    %c127_i32 = arith.constant 127 : i32
    %28 = tpu.dynamic_rotate %9 by %c127_i32 dim 1 : vector<16x128xf32>, i32 -> vector<16x128xf32>
    %29 = arith.subf %28, %9 : vector<16x128xf32>
    %30 = math.absf %29 : vector<16x128xf32>
    %cst_7 = arith.constant 1.000000e+00 : f32
    %31 = vector.broadcast %cst_7 : f32 to vector<16x128xf32>
    %32 = arith.cmpf ole, %30, %31 : vector<16x128xf32>
    %cst_8 = arith.constant 1.07374182E+9 : f32
    %33 = vector.broadcast %cst_8 : f32 to vector<16x128xf32>
    %34 = arith.select %12, %7, %33 : vector<16x128xi1>, vector<16x128xf32>
    %cst_9 = arith.constant 1.07374182E+9 : f32
    %c0_i32 = arith.constant 0 : i32
    %true = arith.constant true
    %35:3 = scf.while (%arg3 = %34, %arg4 = %c0_i32, %arg5 = %true) : (vector<16x128xf32>, i32, i1) -> (vector<16x128xf32>, i32, i1) {
      %c514_i32 = arith.constant 514 : i32
      %58 = arith.cmpi slt, %arg4, %c514_i32 : i32
      %59 = arith.andi %arg5, %58 : i1
      scf.condition(%59) %arg3, %arg4, %arg5 : vector<16x128xf32>, i32, i1
    } do {
    ^bb0(%arg3: vector<16x128xf32>, %arg4: i32, %arg5: i1):
      %c1_i32_23 = arith.constant 1 : i32
      %58 = tpu.dynamic_rotate %arg3 by %c1_i32_23 dim 0 : vector<16x128xf32>, i32 -> vector<16x128xf32>
      %59 = vector.broadcast %cst_9 : f32 to vector<16x128xf32>
      %60 = arith.select %17, %58, %59 : vector<16x128xi1>, vector<16x128xf32>
      %c15_i32_24 = arith.constant 15 : i32
      %61 = tpu.dynamic_rotate %arg3 by %c15_i32_24 dim 0 : vector<16x128xf32>, i32 -> vector<16x128xf32>
      %62 = vector.broadcast %cst_9 : f32 to vector<16x128xf32>
      %63 = arith.select %22, %61, %62 : vector<16x128xi1>, vector<16x128xf32>
      %64 = arith.minimumf %arg3, %60 : vector<16x128xf32>
      %65 = arith.minimumf %64, %63 : vector<16x128xf32>
      %c1_i32_25 = arith.constant 1 : i32
      %66 = tpu.dynamic_rotate %65 by %c1_i32_25 dim 1 : vector<16x128xf32>, i32 -> vector<16x128xf32>
      %67 = vector.broadcast %cst_9 : f32 to vector<16x128xf32>
      %68 = arith.select %27, %66, %67 : vector<16x128xi1>, vector<16x128xf32>
      %c127_i32_26 = arith.constant 127 : i32
      %69 = tpu.dynamic_rotate %65 by %c127_i32_26 dim 1 : vector<16x128xf32>, i32 -> vector<16x128xf32>
      %70 = vector.broadcast %cst_9 : f32 to vector<16x128xf32>
      %71 = arith.select %32, %69, %70 : vector<16x128xi1>, vector<16x128xf32>
      %72 = arith.minimumf %65, %68 : vector<16x128xf32>
      %73 = arith.minimumf %72, %71 : vector<16x128xf32>
      %74 = vector.broadcast %cst_9 : f32 to vector<16x128xf32>
      %75 = arith.select %12, %73, %74 : vector<16x128xi1>, vector<16x128xf32>
      %c1_i32_27 = arith.constant 1 : i32
      %76 = tpu.dynamic_rotate %75 by %c1_i32_27 dim 0 : vector<16x128xf32>, i32 -> vector<16x128xf32>
      %77 = vector.broadcast %cst_9 : f32 to vector<16x128xf32>
      %78 = arith.select %17, %76, %77 : vector<16x128xi1>, vector<16x128xf32>
      %c15_i32_28 = arith.constant 15 : i32
      %79 = tpu.dynamic_rotate %75 by %c15_i32_28 dim 0 : vector<16x128xf32>, i32 -> vector<16x128xf32>
      %80 = vector.broadcast %cst_9 : f32 to vector<16x128xf32>
      %81 = arith.select %22, %79, %80 : vector<16x128xi1>, vector<16x128xf32>
      %82 = arith.minimumf %75, %78 : vector<16x128xf32>
      %83 = arith.minimumf %82, %81 : vector<16x128xf32>
      %c1_i32_29 = arith.constant 1 : i32
      %84 = tpu.dynamic_rotate %83 by %c1_i32_29 dim 1 : vector<16x128xf32>, i32 -> vector<16x128xf32>
      %85 = vector.broadcast %cst_9 : f32 to vector<16x128xf32>
      %86 = arith.select %27, %84, %85 : vector<16x128xi1>, vector<16x128xf32>
      %c127_i32_30 = arith.constant 127 : i32
      %87 = tpu.dynamic_rotate %83 by %c127_i32_30 dim 1 : vector<16x128xf32>, i32 -> vector<16x128xf32>
      %88 = vector.broadcast %cst_9 : f32 to vector<16x128xf32>
      %89 = arith.select %32, %87, %88 : vector<16x128xi1>, vector<16x128xf32>
      %90 = arith.minimumf %83, %86 : vector<16x128xf32>
      %91 = arith.minimumf %90, %89 : vector<16x128xf32>
      %92 = vector.broadcast %cst_9 : f32 to vector<16x128xf32>
      %93 = arith.select %12, %91, %92 : vector<16x128xi1>, vector<16x128xf32>
      %c1_i32_31 = arith.constant 1 : i32
      %94 = tpu.dynamic_rotate %93 by %c1_i32_31 dim 0 : vector<16x128xf32>, i32 -> vector<16x128xf32>
      %95 = vector.broadcast %cst_9 : f32 to vector<16x128xf32>
      %96 = arith.select %17, %94, %95 : vector<16x128xi1>, vector<16x128xf32>
      %c15_i32_32 = arith.constant 15 : i32
      %97 = tpu.dynamic_rotate %93 by %c15_i32_32 dim 0 : vector<16x128xf32>, i32 -> vector<16x128xf32>
      %98 = vector.broadcast %cst_9 : f32 to vector<16x128xf32>
      %99 = arith.select %22, %97, %98 : vector<16x128xi1>, vector<16x128xf32>
      %100 = arith.minimumf %93, %96 : vector<16x128xf32>
      %101 = arith.minimumf %100, %99 : vector<16x128xf32>
      %c1_i32_33 = arith.constant 1 : i32
      %102 = tpu.dynamic_rotate %101 by %c1_i32_33 dim 1 : vector<16x128xf32>, i32 -> vector<16x128xf32>
      %103 = vector.broadcast %cst_9 : f32 to vector<16x128xf32>
      %104 = arith.select %27, %102, %103 : vector<16x128xi1>, vector<16x128xf32>
      %c127_i32_34 = arith.constant 127 : i32
      %105 = tpu.dynamic_rotate %101 by %c127_i32_34 dim 1 : vector<16x128xf32>, i32 -> vector<16x128xf32>
      %106 = vector.broadcast %cst_9 : f32 to vector<16x128xf32>
      %107 = arith.select %32, %105, %106 : vector<16x128xi1>, vector<16x128xf32>
      %108 = arith.minimumf %101, %104 : vector<16x128xf32>
      %109 = arith.minimumf %108, %107 : vector<16x128xf32>
      %110 = vector.broadcast %cst_9 : f32 to vector<16x128xf32>
      %111 = arith.select %12, %109, %110 : vector<16x128xi1>, vector<16x128xf32>
      %c1_i32_35 = arith.constant 1 : i32
      %112 = tpu.dynamic_rotate %111 by %c1_i32_35 dim 0 : vector<16x128xf32>, i32 -> vector<16x128xf32>
      %113 = vector.broadcast %cst_9 : f32 to vector<16x128xf32>
      %114 = arith.select %17, %112, %113 : vector<16x128xi1>, vector<16x128xf32>
      %c15_i32_36 = arith.constant 15 : i32
      %115 = tpu.dynamic_rotate %111 by %c15_i32_36 dim 0 : vector<16x128xf32>, i32 -> vector<16x128xf32>
      %116 = vector.broadcast %cst_9 : f32 to vector<16x128xf32>
      %117 = arith.select %22, %115, %116 : vector<16x128xi1>, vector<16x128xf32>
      %118 = arith.minimumf %111, %114 : vector<16x128xf32>
      %119 = arith.minimumf %118, %117 : vector<16x128xf32>
      %c1_i32_37 = arith.constant 1 : i32
      %120 = tpu.dynamic_rotate %119 by %c1_i32_37 dim 1 : vector<16x128xf32>, i32 -> vector<16x128xf32>
      %121 = vector.broadcast %cst_9 : f32 to vector<16x128xf32>
      %122 = arith.select %27, %120, %121 : vector<16x128xi1>, vector<16x128xf32>
      %c127_i32_38 = arith.constant 127 : i32
      %123 = tpu.dynamic_rotate %119 by %c127_i32_38 dim 1 : vector<16x128xf32>, i32 -> vector<16x128xf32>
      %124 = vector.broadcast %cst_9 : f32 to vector<16x128xf32>
      %125 = arith.select %32, %123, %124 : vector<16x128xi1>, vector<16x128xf32>
      %126 = arith.minimumf %119, %122 : vector<16x128xf32>
      %127 = arith.minimumf %126, %125 : vector<16x128xf32>
      %128 = vector.broadcast %cst_9 : f32 to vector<16x128xf32>
      %129 = arith.select %12, %127, %128 : vector<16x128xi1>, vector<16x128xf32>
      %130 = arith.cmpf one, %129, %arg3 : vector<16x128xf32>
      %cst_39 = arith.constant 1.000000e+00 : f32
      %cst_40 = arith.constant 0.000000e+00 : f32
      %131 = vector.broadcast %cst_39 : f32 to vector<16x128xf32>
      %132 = vector.broadcast %cst_40 : f32 to vector<16x128xf32>
      %133 = arith.select %130, %131, %132 : vector<16x128xi1>, vector<16x128xf32>
      %134 = vector.shape_cast %133 : vector<16x128xf32> to vector<1x16x128xf32>
      %cst_41 = arith.constant dense<0.000000e+00> : vector<1xf32>
      %135 = vector.multi_reduction <add>, %134, %cst_41 [1, 2] : vector<1x16x128xf32> to vector<1xf32>
      %136 = vector.shape_cast %135 : vector<1xf32> to vector<1x1x1xf32>
      %137 = vector.extract %136[0, 0, 0] : f32 from vector<1x1x1xf32>
      %cst_42 = arith.constant 0.000000e+00 : f32
      %138 = arith.cmpf ogt, %137, %cst_42 : f32
      %c1_i32_43 = arith.constant 1 : i32
      %139 = arith.addi %arg4, %c1_i32_43 : i32
      scf.yield %129, %139, %138 : vector<16x128xf32>, i32, i1
    }
    %cst_10 = arith.constant 0.000000e+00 : f32
    %36 = vector.broadcast %cst_10 : f32 to vector<16x128xf32>
    %37 = arith.cmpf one, %0, %36 : vector<16x128xf32>
    %38 = arith.extui %37 : vector<16x128xi1> to vector<16x128xi32>
    %39 = arith.sitofp %38 : vector<16x128xi32> to vector<16x128xf32>
    %cst_11 = arith.constant 0.000000e+00 : f32
    %40 = vector.broadcast %cst_11 : f32 to vector<16x128xf32>
    %41 = arith.cmpf one, %1, %40 : vector<16x128xf32>
    %42 = arith.extui %41 : vector<16x128xi1> to vector<16x128xi32>
    %43 = arith.sitofp %42 : vector<16x128xi32> to vector<16x128xf32>
    %44 = arith.mulf %39, %43 : vector<16x128xf32>
    %45 = arith.addf %39, %43 : vector<16x128xf32>
    %46 = vector.shape_cast %35#0 : vector<16x128xf32> to vector<1x16x128xf32>
    %cst_12 = arith.constant dense<0x7F800000> : vector<1xf32>
    %47 = vector.multi_reduction <minimumf>, %46, %cst_12 [1, 2] : vector<1x16x128xf32> to vector<1xf32>
    %48 = vector.shape_cast %47 : vector<1xf32> to vector<1x1x1xf32>
    %49 = vector.extract %48[0, 0, 0] : f32 from vector<1x1x1xf32>
    %cst_13 = arith.constant 1.07374182E+9 : f32
    %cst_14 = arith.constant 1.07374182E+9 : f32
    %cst_15 = arith.constant 0.000000e+00 : f32
    %cst_16 = arith.constant 0.000000e+00 : f32
    %50:3 = scf.while (%arg3 = %49, %arg4 = %cst_15, %arg5 = %cst_16) : (f32, f32, f32) -> (f32, f32, f32) {
      %58 = arith.cmpf olt, %arg3, %cst_13 : f32
      scf.condition(%58) %arg3, %arg4, %arg5 : f32, f32, f32
    } do {
    ^bb0(%arg3: f32, %arg4: f32, %arg5: f32):
      %58 = vector.broadcast %arg3 : f32 to vector<16x128xf32>
      %59 = arith.cmpf oeq, %35#0, %58 : vector<16x128xf32>
      %60 = arith.extui %59 : vector<16x128xi1> to vector<16x128xi32>
      %61 = arith.sitofp %60 : vector<16x128xi32> to vector<16x128xf32>
      %62 = arith.mulf %44, %61 : vector<16x128xf32>
      %63 = vector.shape_cast %62 : vector<16x128xf32> to vector<1x16x128xf32>
      %cst_23 = arith.constant dense<0.000000e+00> : vector<1xf32>
      %64 = vector.multi_reduction <add>, %63, %cst_23 [1, 2] : vector<1x16x128xf32> to vector<1xf32>
      %65 = vector.shape_cast %64 : vector<1xf32> to vector<1x1x1xf32>
      %66 = vector.extract %65[0, 0, 0] : f32 from vector<1x1x1xf32>
      %67 = arith.mulf %45, %61 : vector<16x128xf32>
      %68 = vector.shape_cast %67 : vector<16x128xf32> to vector<1x16x128xf32>
      %cst_24 = arith.constant dense<0.000000e+00> : vector<1xf32>
      %69 = vector.multi_reduction <add>, %68, %cst_24 [1, 2] : vector<1x16x128xf32> to vector<1xf32>
      %70 = vector.shape_cast %69 : vector<1xf32> to vector<1x1x1xf32>
      %71 = vector.extract %70[0, 0, 0] : f32 from vector<1x1x1xf32>
      %cst_25 = arith.constant 0.000000e+00 : f32
      %72 = arith.cmpf ogt, %71, %cst_25 : f32
      %cst_26 = arith.constant 2.000000e+00 : f32
      %73 = arith.mulf %cst_26, %66 : f32
      %cst_27 = arith.constant 9.99999996E-13 : f32
      %74 = arith.maximumf %71, %cst_27 : f32
      %75 = arith.divf %73, %74 : f32
      %cst_28 = arith.constant 1.000000e+00 : f32
      %76 = arith.select %72, %75, %cst_28 : f32
      %77 = vector.broadcast %arg3 : f32 to vector<16x128xf32>
      %78 = arith.cmpf ogt, %35#0, %77 : vector<16x128xf32>
      %79 = vector.broadcast %cst_14 : f32 to vector<16x128xf32>
      %80 = arith.select %78, %35#0, %79 : vector<16x128xi1>, vector<16x128xf32>
      %81 = vector.shape_cast %80 : vector<16x128xf32> to vector<1x16x128xf32>
      %cst_29 = arith.constant dense<0x7F800000> : vector<1xf32>
      %82 = vector.multi_reduction <minimumf>, %81, %cst_29 [1, 2] : vector<1x16x128xf32> to vector<1xf32>
      %83 = vector.shape_cast %82 : vector<1xf32> to vector<1x1x1xf32>
      %84 = vector.extract %83[0, 0, 0] : f32 from vector<1x1x1xf32>
      %85 = arith.addf %arg4, %76 : f32
      %cst_30 = arith.constant 1.000000e+00 : f32
      %86 = arith.addf %arg5, %cst_30 : f32
      scf.yield %84, %85, %86 : f32, f32, f32
    }
    %cst_17 = arith.constant 0.000000e+00 : f32
    %51 = arith.cmpf ogt, %50#2, %cst_17 : f32
    %cst_18 = arith.constant 1.000000e+00 : f32
    %52 = arith.maximumf %50#2, %cst_18 : f32
    %53 = arith.divf %50#1, %52 : f32
    %cst_19 = arith.constant 1.000000e+00 : f32
    %54 = arith.subf %cst_19, %53 : f32
    %cst_20 = arith.constant 1.000000e+00 : f32
    %55 = arith.select %51, %54, %cst_20 : f32
    %56 = vector.broadcast %55 : f32 to vector<1x1xf32>
    %c0_21 = arith.constant 0 : index
    %c0_22 = arith.constant 0 : index
    %57 = vector.load %arg2[%c0_21, %c0_22] : memref<1x1xf32, #tpu.memory_space<vmem>>, vector<1x1xf32>
    tpu.vector_store %arg2[%c0_21, %c0_22], %56 {strides = array<i32>} : memref<1x1xf32, #tpu.memory_space<vmem>>, vector<1x1xf32>,
    return
  }
}

</mosaic_0001>

<llo_original>
// kernel: tpu_custom_call.1
$region0: #{tpu_custom_call.1}
  #allocation0 [shape = 'u32[]', space=smem, size = 0x4, offset = 0x4, fixed_abs, tag = 'smem constant byte address 0x4 - core index']
  #allocation1 [shape = 'u32[144,128]{1,0:T(1,128)}', space=vmem, size = 0x12000, scoped, tag = 'internal scratch']
  %s0 = inlined_call_operand.hbm [shape: f32[16,128], index: 0, kind: input, shape index: {}]
  %s1 = inlined_call_operand.hbm [shape: f32[16,128], index: 1, kind: input, shape index: {}]
  %s2 = inlined_call_operand.hbm [shape: f32[1,1], index: 2, kind: output, shape index: {}]
  %s3 = sld [smem:[#allocation0]]
  $region40: #{tpu_custom_call.1} parent=0
    _
  %s5 = ssub.s32 1, %s3
  %s6 = scalar_select 0, %s5, %s3
  $region1: #{tpu_custom_call.1} parent=0
    #allocation2 [shape = 'u8[8192]{0}', space=vmem, size = 0x2000, scoped, tag = 'input window, operand 0, single buffered']
    #allocation3 [shape = 's32[1]{0}', space=sflag, size = 0x4, scoped, tag = 'scoped memory for tpu_custom_call.1']
    #allocation4 [shape = 's32[1]{0}', space=sflag, size = 0x4, scoped, tag = 'scoped memory for tpu_custom_call.1']
    #allocation5 [shape = 'u8[8192]{0}', space=vmem, size = 0x2000, scoped, tag = 'input window, operand 1, single buffered']
    #allocation6 [shape = 's32[1]{0}', space=sflag, size = 0x4, scoped, tag = 'scoped memory for tpu_custom_call.1']
    #allocation7 [shape = 'u8[512]{0}', space=vmem, size = 0x400, scoped, tag = 'output window, operand 0, single buffered']
    %7 = vsyncpa [#allocation3], 0
    %8 = vsyncpa [#allocation6], 0
    %9 = vsyncpa [#allocation4], 0
    // Predicated region
    $region2: #{tpu_custom_call.1} parent=1 // pred_check
      _
    $region3: #{tpu_custom_call.1} parent=1 // pred_check_branch
      %11 = sbr.rel (0) target = $region5
    $region4: #{tpu_custom_call.1} parent=1 // pred_region
      %s13 = ssub.s32 256, 256
      %14 = vsyncadd [#allocation3], %s13
      %s15 = sshll.u32 [#allocation2], 4
      %s16 = int_to_ptr.vmem [resolvable:$true] %s15
      %21 = dma.hbm_to_vmem [thread:$0]  %s0, 256, %s16, [#allocation3], 128, 128, 8
    $region5: #{tpu_custom_call.1} parent=1 // pred_fallthru
      _
    // Predicated region
    $region6: #{tpu_custom_call.1} parent=1 // pred_check
      _
    $region7: #{tpu_custom_call.1} parent=1 // pred_check_branch
      %23 = sbr.rel (0) target = $region9
    $region8: #{tpu_custom_call.1} parent=1 // pred_region
      %s25 = ssub.s32 256, 256
      %26 = vsyncadd [#allocation6], %s25
      %s27 = sshll.u32 [#allocation5], 4
      %s28 = int_to_ptr.vmem [resolvable:$true] %s27
      %33 = dma.hbm_to_vmem [thread:$0]  %s1, 256, %s28, [#allocation6], 128, 128, 8
    $region9: #{tpu_custom_call.1} parent=1 // pred_fallthru
      _
    // Predicated region
    $region10: #{tpu_custom_call.1} parent=1 // pred_check
      _
    $region11: #{tpu_custom_call.1} parent=1 // pred_check_branch
      %35 = sbr.rel (0) target = $region13
    $region12: #{tpu_custom_call.1} parent=1 // pred_region
      %36 = dma.done [#allocation3], 256
    $region13: #{tpu_custom_call.1} parent=1 // pred_fallthru
      _
    // Predicated region
    $region14: #{tpu_custom_call.1} parent=1 // pred_check
      _
    $region15: #{tpu_custom_call.1} parent=1 // pred_check_branch
      %38 = sbr.rel (0) target = $region17
    $region16: #{tpu_custom_call.1} parent=1 // pred_region
      %39 = dma.done [#allocation6], 256
    $region17: #{tpu_custom_call.1} parent=1 // pred_fallthru
      _
    %v40 = vld [vmem:[#allocation2] sm:$0xff]
    %v41 = vld [vmem:[#allocation2 + $0x8] sm:$0xff]
    %v42 = vld [vmem:[#allocation5] sm:$0xff]
    %v43 = vld [vmem:[#allocation5 + $0x8] sm:$0xff]
    %v44 = vlaneseq
    %v45 = vshrl.u32 %v44, 7
    %v46 = vadd.s32 %v45, 8
    %v47 = vlaneseq
    %v48 = vand.u32 %v47, 127
    %v49 = vmul.u32 %v45, 128
    %v50 = vmul.u32 %v46, 128
    %v51 = vadd.s32 %v49, %v48
    %v52 = vadd.s32 %v50, %v48
    %v53 = vcvt.s32.f32 %v51
    %v54 = vcvt.s32.f32 %v52
    %v55 = vcvt.s32.f32 %v45
    %v56 = vcvt.s32.f32 %v46
    %v57 = vcvt.s32.f32 %v48
    %v58 = vadd.f32 %v40, %v42
    %v59 = vadd.f32 %v41, %v43
    %vm60 = vcmp.gt.f32.partialorder %v58, 0.0
    %vm61 = vcmp.gt.f32.partialorder %v59, 0.0
    %v62 = vrot.slane %v55, 7
    %v63 = vrot.slane %v56, 7
    %vm64 = vcmp.lt.s32.totalorder %v45, 1
    %v65 = vsel %vm64, %v62, %v63
    %v66 = vsel %vm64, %v63, %v62
    %v67 = vsub.f32 %v66, %v55
    %v68 = vsub.f32 %v65, %v56
    %v69 = vand.u32 2147483647, %v67
    %v70 = vand.u32 2147483647, %v68
    %vm71 = vcmp.le.f32.partialorder %v69, 1.0
    %vm72 = vcmp.le.f32.partialorder %v70, 1.0
    %v73 = vrot.slane %v55, 1
    %v74 = vrot.slane %v56, 1
    %vm75 = vcmp.lt.s32.totalorder %v45, 7
    %v76 = vsel %vm75, %v73, %v74
    %v77 = vsel %vm75, %v74, %v73
    %v78 = vsub.f32 %v76, %v55
    %v79 = vsub.f32 %v77, %v56
    %v80 = vand.u32 2147483647, %v78
    %v81 = vand.u32 2147483647, %v79
    %vm82 = vcmp.le.f32.partialorder %v80, 1.0
    %vm83 = vcmp.le.f32.partialorder %v81, 1.0
    %84 = vrot.lane.b32.xlu0 %v57, 1
    %v85 = vpop.permute.xlu0 %84
    %v86 = vsub.f32 %v85, %v57
    %v87 = vand.u32 2147483647, %v86
    %vm88 = vcmp.le.f32.partialorder %v87, 1.0
    %89 = vrot.lane.b32.xlu0 %v57, 127
    %v90 = vpop.permute.xlu0 %89
    %v91 = vsub.f32 %v90, %v57
    %v92 = vand.u32 2147483647, %v91
    %vm93 = vcmp.le.f32.partialorder %v92, 1.0
    %v94 = vsel %vm60, %v53, 1.0737418e+09
    %v95 = vsel %vm61, %v54, 1.0737418e+09
    // While loop
    $region18: #{tpu_custom_call.1} parent=1 // loop_pre_header
      _
    $region19: #{tpu_custom_call.1} parent=1 // loop_header
      %v97 = vphi %v94, %v240
      %v98 = vphi %v95, %v241
      %s99 = sphi 0, %s257
      %p100 = pphi 1, %p256
      %p101 = scmp.lt.s32.totalorder %s99, 514
      %p102 = pnand %p100, %p101
      %p103 = pneg %p102
    $region20: #{tpu_custom_call.1} parent=1 // loop_header_branch
      %105 = sbr.rel (%p102) target = $region24
    $region21: #{tpu_custom_call.1} parent=1 // loop_body
      %v106 = vrot.slane %v97, 7
      %v107 = vrot.slane %v98, 7
      %v108 = vsel %vm64, %v106, %v107
      %v109 = vsel %vm64, %v107, %v106
      %v110 = vsel %vm71, %v109, 1.0737418e+09
      %v111 = vsel %vm72, %v108, 1.0737418e+09
      %v112 = vrot.slane %v97, 1
      %v113 = vrot.slane %v98, 1
      %v114 = vsel %vm75, %v112, %v113
      %v115 = vsel %vm75, %v113, %v112
      %v116 = vsel %vm82, %v114, 1.0737418e+09
      %v117 = vsel %vm83, %v115, 1.0737418e+09
      %v118 = vmin.f32 %v97, %v110
      %v119 = vmin.f32 %v98, %v111
      %v120 = vmin.f32 %v118, %v116
      %v121 = vmin.f32 %v119, %v117
      %122 = vrot.lane.b32.xlu0 %v120, 1
      %v123 = vpop.permute.xlu0 %122
      %124 = vrot.lane.b32.xlu0 %v121, 1
      %v125 = vpop.permute.xlu0 %124
      %v126 = vsel %vm88, %v123, 1.0737418e+09
      %v127 = vsel %vm88, %v125, 1.0737418e+09
      %128 = vrot.lane.b32.xlu0 %v120, 127
      %v129 = vpop.permute.xlu0 %128
      %130 = vrot.lane.b32.xlu0 %v121, 127
      %v131 = vpop.permute.xlu0 %130
      %v132 = vsel %vm93, %v129, 1.0737418e+09
      %v133 = vsel %vm93, %v131, 1.0737418e+09
      %v134 = vmin.f32 %v120, %v126
      %v135 = vmin.f32 %v121, %v127
      %v136 = vmin.f32 %v134, %v132
      %v137 = vmin.f32 %v135, %v133
      %v138 = vsel %vm60, %v136, 1.0737418e+09
      %v139 = vsel %vm61, %v137, 1.0737418e+09
      %v140 = vrot.slane %v138, 7
      %v141 = vrot.slane %v139, 7
      %v142 = vsel %vm64, %v140, %v141
      %v143 = vsel %vm64, %v141, %v140
      %v144 = vsel %vm71, %v143, 1.0737418e+09
      %v145 = vsel %vm72, %v142, 1.0737418e+09
      %v146 = vrot.slane %v138, 1
      %v147 = vrot.slane %v139, 1
      %v148 = vsel %vm75, %v146, %v147
      %v149 = vsel %vm75, %v147, %v146
      %v150 = vsel %vm82, %v148, 1.0737418e+09
      %v151 = vsel %vm83, %v149, 1.0737418e+09
      %v152 = vmin.f32 %v138, %v144
      %v153 = vmin.f32 %v139, %v145
      %v154 = vmin.f32 %v152, %v150
      %v155 = vmin.f32 %v153, %v151
      %156 = vrot.lane.b32.xlu0 %v154, 1
      %v157 = vpop.permute.xlu0 %156
      %158 = vrot.lane.b32.xlu0 %v155, 1
      %v159 = vpop.permute.xlu0 %158
      %v160 = vsel %vm88, %v157, 1.0737418e+09
      %v161 = vsel %vm88, %v159, 1.0737418e+09
      %162 = vrot.lane.b32.xlu0 %v154, 127
      %v163 = vpop.permute.xlu0 %162
      %164 = vrot.lane.b32.xlu0 %v155, 127
      %v165 = vpop.permute.xlu0 %164
      %v166 = vsel %vm93, %v163, 1.0737418e+09
      %v167 = vsel %vm93, %v165, 1.0737418e+09
      %v168 = vmin.f32 %v154, %v160
      %v169 = vmin.f32 %v155, %v161
      %v170 = vmin.f32 %v168, %v166
      %v171 = vmin.f32 %v169, %v167
      %v172 = vsel %vm60, %v170, 1.0737418e+09
      %v173 = vsel %vm61, %v171, 1.0737418e+09
      %v174 = vrot.slane %v172, 7
      %v175 = vrot.slane %v173, 7
      %v176 = vsel %vm64, %v174, %v175
      %v177 = vsel %vm64, %v175, %v174
      %v178 = vsel %vm71, %v177, 1.0737418e+09
      %v179 = vsel %vm72, %v176, 1.0737418e+09
      %v180 = vrot.slane %v172, 1
      %v181 = vrot.slane %v173, 1
      %v182 = vsel %vm75, %v180, %v181
      %v183 = vsel %vm75, %v181, %v180
      %v184 = vsel %vm82, %v182, 1.0737418e+09
      %v185 = vsel %vm83, %v183, 1.0737418e+09
      %v186 = vmin.f32 %v172, %v178
      %v187 = vmin.f32 %v173, %v179
      %v188 = vmin.f32 %v186, %v184
      %v189 = vmin.f32 %v187, %v185
      %190 = vrot.lane.b32.xlu0 %v188, 1
      %v191 = vpop.permute.xlu0 %190
      %192 = vrot.lane.b32.xlu0 %v189, 1
      %v193 = vpop.permute.xlu0 %192
      %v194 = vsel %vm88, %v191, 1.0737418e+09
      %v195 = vsel %vm88, %v193, 1.0737418e+09
      %196 = vrot.lane.b32.xlu0 %v188, 127
      %v197 = vpop.permute.xlu0 %196
      %198 = vrot.lane.b32.xlu0 %v189, 127
      %v199 = vpop.permute.xlu0 %198
      %v200 = vsel %vm93, %v197, 1.0737418e+09
      %v201 = vsel %vm93, %v199, 1.0737418e+09
      %v202 = vmin.f32 %v188, %v194
      %v203 = vmin.f32 %v189, %v195
      %v204 = vmin.f32 %v202, %v200
      %v205 = vmin.f32 %v203, %v201
      %v206 = vsel %vm60, %v204, 1.0737418e+09
      %v207 = vsel %vm61, %v205, 1.0737418e+09
      %v208 = vrot.slane %v206, 7
      %v209 = vrot.slane %v207, 7
      %v210 = vsel %vm64, %v208, %v209
      %v211 = vsel %vm64, %v209, %v208
      %v212 = vsel %vm71, %v211, 1.0737418e+09
      %v213 = vsel %vm72, %v210, 1.0737418e+09
      %v214 = vrot.slane %v206, 1
      %v215 = vrot.slane %v207, 1
      %v216 = vsel %vm75, %v214, %v215
      %v217 = vsel %vm75, %v215, %v214
      %v218 = vsel %vm82, %v216, 1.0737418e+09
      %v219 = vsel %vm83, %v217, 1.0737418e+09
      %v220 = vmin.f32 %v206, %v212
      %v221 = vmin.f32 %v207, %v213
      %v222 = vmin.f32 %v220, %v218
      %v223 = vmin.f32 %v221, %v219
      %224 = vrot.lane.b32.xlu0 %v222, 1
      %v225 = vpop.permute.xlu0 %224
      %226 = vrot.lane.b32.xlu0 %v223, 1
      %v227 = vpop.permute.xlu0 %226
      %v228 = vsel %vm88, %v225, 1.0737418e+09
      %v229 = vsel %vm88, %v227, 1.0737418e+09
      %230 = vrot.lane.b32.xlu0 %v222, 127
      %v231 = vpop.permute.xlu0 %230
      %232 = vrot.lane.b32.xlu0 %v223, 127
      %v233 = vpop.permute.xlu0 %232
      %v234 = vsel %vm93, %v231, 1.0737418e+09
      %v235 = vsel %vm93, %v233, 1.0737418e+09
      %v236 = vmin.f32 %v222, %v228
      %v237 = vmin.f32 %v223, %v229
      %v238 = vmin.f32 %v236, %v234
      %v239 = vmin.f32 %v237, %v235
      %v240 = vsel %vm60, %v238, 1.0737418e+09
      %v241 = vsel %vm61, %v239, 1.0737418e+09
      %vm242 = vcmp.ne.f32.partialorder %v240, %v97
      %vm243 = vcmp.ne.f32.partialorder %v241, %v98
      %v244 = vsel %vm242, 1.0, 0.0
      %v245 = vsel %vm243, 1.0, 0.0
      %v246 = vadd.f32 %v244, %v245
      %247 = vadd.xlane.f32.xlu0 %v246
      %v248 = vpop.xlane.xlu0 %247
      %v249 = vrot.slane %v248, 4
      %v250 = vadd.f32 %v248, %v249
      %v251 = vrot.slane %v250, 2
      %v252 = vadd.f32 %v250, %v251
      %v253 = vrot.slane %v252, 1
      %v254 = vadd.f32 %v252, %v253
      %s255 = vtos %v254
      %p256 = scmp.gt.f32.partialorder %s255, 0.0
      %s257 = sadd.s32 %s99, 1
    $region22: #{tpu_custom_call.1} parent=1 // loop_footer
      _
    $region23: #{tpu_custom_call.1} parent=1 // loop_footer_branch
      %96 = sbr.rel target = $region19
    $region24: #{tpu_custom_call.1} parent=1 // loop_exit
      _
    %vm258 = vcmp.ne.f32.partialorder %v40, 0.0
    %vm259 = vcmp.ne.f32.partialorder %v41, 0.0
    %v260 = vsel %vm258, 1, 0
    %v261 = vsel %vm259, 1, 0
    %v262 = vcvt.s32.f32 %v260
    %v263 = vcvt.s32.f32 %v261
    %vm264 = vcmp.ne.f32.partialorder %v42, 0.0
    %vm265 = vcmp.ne.f32.partialorder %v43, 0.0
    %v266 = vsel %vm264, 1, 0
    %v267 = vsel %vm265, 1, 0
    %v268 = vcvt.s32.f32 %v266
    %v269 = vcvt.s32.f32 %v267
    %v270 = vmul.f32 %v262, %v268
    %v271 = vmul.f32 %v263, %v269
    %v272 = vadd.f32 %v262, %v268
    %v273 = vadd.f32 %v263, %v269
    %v274 = vmin.f32 %v97, %v98
    %275 = vmin.xlane.f32.xlu0 %v274
    %v276 = vpop.xlane.xlu0 %275
    %v277 = vrot.slane %v276, 4
    %v278 = vmin.f32 %v276, %v277
    %v279 = vrot.slane %v278, 2
    %v280 = vmin.f32 %v278, %v279
    %v281 = vrot.slane %v280, 1
    %v282 = vmin.f32 %v280, %v281
    %s283 = vtos %v282
    // While loop
    $region25: #{tpu_custom_call.1} parent=1 // loop_pre_header
      _
    $region26: #{tpu_custom_call.1} parent=1 // loop_header
      %s285 = sphi %s283, %s344
      %s286 = sphi 0.0, %s345
      %s287 = sphi 0.0, %s346
      %p288 = scmp.lt.f32.partialorder %s285, 1.0737418e+09
      %p289 = pneg %p288
    $region27: #{tpu_custom_call.1} parent=1 // loop_header_branch
      %291 = sbr.rel (%p289) target = $region31
    $region28: #{tpu_custom_call.1} parent=1 // loop_body
      %v292 = vstv %s285
      %vm293 = vcmp.eq.f32.partialorder %v97, %v292
      %vm294 = vcmp.eq.f32.partialorder %v98, %v292
      %v295 = vsel %vm293, 1, 0
      %v296 = vsel %vm294, 1, 0
      %v297 = vcvt.s32.f32 %v295
      %v298 = vcvt.s32.f32 %v296
      %v299 = vmul.f32 %v270, %v297
      %v300 = vmul.f32 %v271, %v298
      %v301 = vadd.f32 %v299, %v300
      %302 = vadd.xlane.f32.xlu0 %v301
      %v303 = vpop.xlane.xlu0 %302
      %v304 = vrot.slane %v303, 4
      %v305 = vadd.f32 %v303, %v304
      %v306 = vrot.slane %v305, 2
      %v307 = vadd.f32 %v305, %v306
      %v308 = vrot.slane %v307, 1
      %v309 = vadd.f32 %v307, %v308
      %s310 = vtos %v309
      %v311 = vmul.f32 %v272, %v297
      %v312 = vmul.f32 %v273, %v298
      %v313 = vadd.f32 %v311, %v312
      %314 = vadd.xlane.f32.xlu0 %v313
      %v315 = vpop.xlane.xlu0 %314
      %v316 = vrot.slane %v315, 4
      %v317 = vadd.f32 %v315, %v316
      %v318 = vrot.slane %v317, 2
      %v319 = vadd.f32 %v317, %v318
      %v320 = vrot.slane %v319, 1
      %v321 = vadd.f32 %v319, %v320
      %s322 = vtos %v321
      %p323 = scmp.gt.f32.partialorder %s322, 0.0
      %s324 = smul.f32 %s310, 2.0
      %s325 = smax.f32 %s322, 1e-12
      %v326 = vstv %s325
      %v327 = vrcp.pop %v326
      %s328 = vtos %v327
      %s329 = smul.f32 %s324, %s328
      %s330 = scalar_select %p323, %s329, 1.0
      %vm331 = vcmp.gt.f32.partialorder %v97, %v292
      %vm332 = vcmp.gt.f32.partialorder %v98, %v292
      %v333 = vsel %vm331, %v97, 1.0737418e+09
      %v334 = vsel %vm332, %v98, 1.0737418e+09
      %v335 = vmin.f32 %v333, %v334
      %336 = vmin.xlane.f32.xlu0 %v335
      %v337 = vpop.xlane.xlu0 %336
      %v338 = vrot.slane %v337, 4
      %v339 = vmin.f32 %v337, %v338
      %v340 = vrot.slane %v339, 2
      %v341 = vmin.f32 %v339, %v340
      %v342 = vrot.slane %v341, 1
      %v343 = vmin.f32 %v341, %v342
      %s344 = vtos %v343
      %s345 = sadd.f32 %s286, %s330
      %s346 = sadd.f32 %s287, 1.0
    $region29: #{tpu_custom_call.1} parent=1 // loop_footer
      _
    $region30: #{tpu_custom_call.1} parent=1 // loop_footer_branch
      %284 = sbr.rel target = $region26
    $region31: #{tpu_custom_call.1} parent=1 // loop_exit
      _
    %p347 = scmp.gt.f32.partialorder %s287, 0.0
    %s348 = smax.f32 %s287, 1.0
    %v349 = vstv %s348
    %v350 = vrcp.pop %v349
    %s351 = vtos %v350
    %s352 = smul.f32 %s286, %s351
    %s353 = ssub.f32 1.0, %s352
    %s354 = scalar_select %p347, %s353, 1.0
    %v355 = vstv %s354
    %vm356 = vcmask 0
    %357 = vst.msk [vmem:[#allocation7] sm:$0x1] %vm356, %v355
    // Predicated region
    $region32: #{tpu_custom_call.1} parent=1 // pred_check
      _
    $region33: #{tpu_custom_call.1} parent=1 // pred_check_branch
      %359 = sbr.rel (0) target = $region35
    $region34: #{tpu_custom_call.1} parent=1 // pred_region
      %s361 = ssub.s32 16, 16
      %362 = vsyncadd [#allocation4], %s361
      %s364 = sshll.u32 [#allocation7], 4
      %s365 = int_to_ptr.vmem [resolvable:$true] %s364
      %367 = dma.vmem_to_hbm [thread:$0]  %s365, 16, %s2, [#allocation4]
    $region35: #{tpu_custom_call.1} parent=1 // pred_fallthru
      _
    // Predicated region
    $region36: #{tpu_custom_call.1} parent=1 // pred_check
      _
    $region37: #{tpu_custom_call.1} parent=1 // pred_check_branch
      %369 = sbr.rel (0) target = $region39
    $region38: #{tpu_custom_call.1} parent=1 // pred_region
      %370 = dma.done [#allocation4], 16
    $region39: #{tpu_custom_call.1} parent=1 // pred_fallthru
      _
    %371 = vsyncpa [#allocation3], 1
    %372 = vsyncpa [#allocation6], 1
    %373 = vsyncpa [#allocation4], 1

</llo_original>
